<compile_context>
chip_gen: v7x
topology: tpu7x:2x2x1
jax: 0.10.0
libtpu: 0.0.40
codegen_flags: <defaults>
</compile_context>

<pallas_src>
import functools

import jax
import jax.numpy as jnp
from jax.experimental import pallas as pl
from jax.experimental.pallas import tpu as pltpu


def _hinge_kernel(x_ref, y_ref, out_ref, acc_ref, *, margin, rows_valid,
                  block_rows, lanes, nblocks, has_row_tail, overcovered):
    p = pl.program_id(0)            # partial / core index   ("parallel")
    i = pl.program_id(1)            # reduction step         ("arbitrary")
    g = pl.num_programs(1)
    blk = p * g + i                 # logical (un-clamped) block index

    # Zero this partial's one-vreg-row accumulator at the start of its pass.
    @pl.when(i == 0)
    def _init():
        acc_ref[...] = jnp.zeros_like(acc_ref)

    def accumulate(mask_tail_rows):
        x = x_ref[...].astype(jnp.float32)
        y_t = 2.0 * jnp.round(y_ref[...].astype(jnp.float32)) - 1.0
        loss = jnp.maximum(jnp.float32(0.0), jnp.float32(margin) - x * y_t)
        if mask_tail_rows:  # static: only traced for the tail-block branch
            rem = rows_valid - blk * block_rows          # valid rows in block
            row = jax.lax.broadcasted_iota(jnp.int32, (block_rows, lanes), 0)
            loss = jnp.where(row < rem, loss, jnp.float32(0.0))
        if block_rows % 8 == 0:
            # vreg-aligned fold into an (8, lanes) accumulator: pure VPU adds,
            # one small RMW per block instead of one per data vreg.
            acc_ref[...] += loss.reshape(block_rows // 8, 8, lanes).sum(axis=0)
        else:
            # tiny single-block case (block_rows == rows < 8 or not 8-aligned)
            acc_ref[0:1, :] += loss.sum(axis=0, keepdims=True)

    if has_row_tail:
        @pl.when(blk < nblocks - 1)          # steady state: unmasked
        def _steady():
            accumulate(False)

        @pl.when(blk == nblocks - 1)         # the one partial tail block
        def _tail():
            accumulate(True)
    elif overcovered:
        @pl.when(blk < nblocks)              # skip clamped duplicate steps
        def _steady():
            accumulate(False)
    else:
        accumulate(False)                    # exact grid: no gating at all

    # Epilogue: single cross-lane/sublane reduce + scalar SMEM store per part.
    @pl.when(i == g - 1)
    def _finalize():
        out_ref[0, 0] = jnp.sum(acc_ref[...])


def _hinge_jnp(x, y, margin):
    """Plain-jnp hinge (used for the <128-element tail and as the reference)."""
    xf = x.astype(jnp.float32)
    y_t = 2.0 * jnp.round(y.astype(jnp.float32)) - 1.0
    return jnp.maximum(0.0, jnp.float32(margin) - xf * y_t).sum()


def _detect_num_cores():
    """Best-effort TensorCore count of device 0 (0 if unknown)."""
    try:
        dev = jax.devices()[0]
        for attr in ("num_cores", "core_count", "num_tensorcores"):
            v = getattr(dev, attr, None)
            if isinstance(v, int) and v > 0:
                return v
    except Exception:
        pass
    return 0


def hinge_loss(x, y, margin, *, block_bytes=4 << 20, num_parts=None):
    """HingeLoss.forward(x, y) as a Pallas TPU kernel.  Returns an f32 scalar.

    Inputs may be f32 / bf16 / integer-typed: they are streamed in their native
    dtype and upcast to f32 inside VMEM, so passing bf16 logits/labels halves
    HBM traffic (the kernel is HBM-bound on every TPU generation).
    """
    n = x.size
    if n == 0:
        return jnp.float32(0.0)

    flat_x = x.reshape(-1)
    flat_y = y.reshape(-1)

    # <128-element unaligned remainder: plain jnp, no whole-array pad copy.
    tail = n % 128
    n_main = n - tail
    tail_loss = None
    if tail:
        tail_loss = _hinge_jnp(flat_x[n_main:], flat_y[n_main:], margin)
        if n_main == 0:
            return tail_loss
        flat_x = flat_x[:n_main]
        flat_y = flat_y[:n_main]

    # Widest lane count that divides the element count (lane-dense 2-D view).
    for lanes in (1024, 512, 256, 128):
        if n_main % lanes == 0:
            break
    rows = n_main // lanes

    # ~block_bytes of f32 per input per grid step.
    target_rows = max(8, block_bytes // (lanes * 4))
    if rows <= target_rows:
        block_rows = rows
    else:
        block_rows = max(32, (target_rows // 32) * 32)   # packed-dtype friendly
        if block_rows >= rows:
            block_rows = rows
    nblocks = -(-rows // block_rows)

    # Megacore / multi-TC split along the "parallel" grid axis.
    if num_parts is None:
        cores = _detect_num_cores()
        cand = cores if cores >= 2 else 2
        num_parts = cand if nblocks >= 2 * cand else 1
    num_parts = max(1, min(int(num_parts), nblocks))

    # Re-balance block_rows (when cheaply possible) so the block count splits
    # evenly across parts — avoids one redundant clamped-block DMA per launch.
    if num_parts > 1 and nblocks % num_parts != 0:
        even_blocks = num_parts * (-(-nblocks // num_parts))
        cand_rows = -(-rows // even_blocks)
        cand_rows = max(8, ((cand_rows + 7) // 8) * 8)   # keep (8,128) tiling
        if cand_rows < rows and -(-rows // cand_rows) == even_blocks:
            block_rows = cand_rows
            nblocks = even_blocks

    g_inner = -(-nblocks // num_parts)
    overcovered = (num_parts * g_inner) != nblocks
    has_row_tail = (rows % block_rows) != 0

    x2 = flat_x.reshape(rows, lanes)
    y2 = flat_y.reshape(rows, lanes)

    if overcovered:
        def in_map(p, i):
            # Clamp so no DMA targets a fully out-of-range block; the kernel
            # skips compute for those steps.
            return (jnp.minimum(p * g_inner + i, nblocks - 1), 0)
    else:
        def in_map(p, i):
            return (p * g_inner + i, 0)

    # Explicit scoped-VMEM budget: 2 inputs x 2 pipeline buffers + temporaries
    # + headroom; valid on v5e/v6e (128 MiB physical) and v7x (64 MiB).
    itemsize = jnp.dtype(x.dtype).itemsize + jnp.dtype(y.dtype).itemsize
    in_bytes = 2 * block_rows * lanes * itemsize
    vmem_limit = int(min(max(2 * in_bytes + (4 << 20), 16 << 20), 60 << 20))

    out = pl.pallas_call(
        functools.partial(
            _hinge_kernel,
            margin=float(margin),
            rows_valid=rows,
            block_rows=block_rows,
            lanes=lanes,
            nblocks=nblocks,
            has_row_tail=has_row_tail,
            overcovered=overcovered,
        ),
        out_shape=jax.ShapeDtypeStruct((num_parts, 1), jnp.float32),
        grid_spec=pltpu.PrefetchScalarGridSpec(
            num_scalar_prefetch=0,
            grid=(num_parts, g_inner),
            in_specs=[
                pl.BlockSpec((block_rows, lanes), in_map),
                pl.BlockSpec((block_rows, lanes), in_map),
            ],
            out_specs=pl.BlockSpec(
                (1, 1), lambda p, i: (p, 0), memory_space=pltpu.SMEM
            ),
            scratch_shapes=[pltpu.VMEM((8, lanes), jnp.float32)],
        ),
        compiler_params=pltpu.CompilerParams(
            dimension_semantics=("parallel", "arbitrary"),
            vmem_limit_bytes=vmem_limit,
        ),
    )(x2, y2)

    total = out.sum()
    if tail_loss is not None:
        total = total + tail_loss
    return total


if __name__ == "__main__":
    margin = 1.0
    keys = jax.random.split(jax.random.PRNGKey(0), 10)

    def ref(x, y):
        return _hinge_jnp(x, y, margin)

    # 1) Baseline NCHW case from the module (single block, no masking).
    x1 = jax.random.normal(keys[0], (2, 4, 16, 16), dtype=jnp.float32)
    y1 = jax.random.bernoulli(keys[1], 0.5, (2, 4, 16, 16)).astype(jnp.float32)
    out1 = jax.block_until_ready(hinge_loss(x1, y1, margin))
    assert jnp.allclose(out1, ref(x1, y1), rtol=1e-5, atol=1e-2), (out1, ref(x1, y1))

    # 2) Tiny non-lane-aligned shape: pure jnp tail path (no kernel launch).
    x2 = jax.random.normal(keys[2], (3, 5, 7), dtype=jnp.float32)
    y2 = jax.random.bernoulli(keys[3], 0.5, (3, 5, 7)).astype(jnp.float32)
    out2 = jax.block_until_ready(hinge_loss(x2, y2, margin))
    assert jnp.allclose(out2, ref(x2, y2), rtol=1e-5, atol=1e-2), (out2, ref(x2, y2))

    # 3) Multi-block + explicit 2-part split with a partial (masked) tail block.
    x3 = jax.random.normal(keys[4], (10, 4, 32, 32), dtype=jnp.float32)
    y3 = jax.random.bernoulli(keys[5], 0.5, (10, 4, 32, 32)).astype(jnp.float32)
    out3 = jax.block_until_ready(
        hinge_loss(x3, y3, margin, block_bytes=32 * 1024, num_parts=2))
    assert jnp.allclose(out3, ref(x3, y3), rtol=1e-5, atol=1e-1), (out3, ref(x3, y3))

    # 4) bf16 inputs + 128-aligned-prefix kernel + <128-element jnp tail.
    x4 = jax.random.normal(keys[6], (3, 1000), dtype=jnp.bfloat16)
    y4 = jax.random.bernoulli(keys[7], 0.5, (3, 1000)).astype(jnp.bfloat16)
    out4 = jax.block_until_ready(hinge_loss(x4, y4, margin))
    assert jnp.allclose(out4, ref(x4, y4), rtol=1e-4, atol=5e-2), (out4, ref(x4, y4))

    # 5) Odd block count: exercises steady/tail blocks + clamped-skip step.
    x5 = jax.random.normal(keys[8], (150, 1024), dtype=jnp.float32)
    y5 = jax.random.bernoulli(keys[9], 0.5, (150, 1024)).astype(jnp.float32)
    out5 = jax.block_until_ready(
        hinge_loss(x5, y5, margin, block_bytes=32 * 1024, num_parts=2))
    assert jnp.allclose(out5, ref(x5, y5), rtol=1e-5, atol=1e-1), (out5, ref(x5, y5))

    print("KERNEL_OK")
</pallas_src>

<mosaic_0001>
module attributes {stable_mosaic.version = 11 : i64} {
  func.func @_hinge_kernel(%arg0: i32, %arg1: i32, %arg2: memref<2x1024xf32, #tpu.memory_space<vmem>>, %arg3: memref<2x1024xf32, #tpu.memory_space<vmem>>, %arg4: memref<1x1xf32, #tpu.memory_space<smem>>, %arg5: memref<8x1024xf32, #tpu.memory_space<vmem>>) attributes {dimension_semantics = [#tpu.dimension_semantics<parallel>, #tpu.dimension_semantics<arbitrary>], iteration_bounds = array<i64: 1, 1>, scalar_prefetch = 0 : i64, scratch_operands = 1 : i64, tpu.core_type = #tpu.core_type<tc>, window_params = [{transform_indices = @transform_0, window_bounds = array<i64: 2, 1024>}, {transform_indices = @transform_1, window_bounds = array<i64: 2, 1024>}, {transform_indices = @transform_2, window_bounds = array<i64: 1, 1>}]} {
    %c0_i32 = arith.constant 0 : i32
    %0 = arith.cmpi eq, %arg1, %c0_i32 : i32
    %1 = arith.extui %0 : i1 to i32
    %c0_i32_0 = arith.constant 0 : i32
    %2 = arith.cmpi ne, %1, %c0_i32_0 : i32
    scf.if %2 {
      %cst_14 = arith.constant 0.000000e+00 : f32
      %23 = vector.broadcast %cst_14 : f32 to vector<8x1024xf32>
      %c0_15 = arith.constant 0 : index
      %c0_16 = arith.constant 0 : index
      %24 = vector.load %arg5[%c0_15, %c0_16] : memref<8x1024xf32, #tpu.memory_space<vmem>>, vector<8x1024xf32>
      tpu.vector_store %arg5[%c0_15, %c0_16], %23 {strides = array<i32>} : memref<8x1024xf32, #tpu.memory_space<vmem>>, vector<8x1024xf32>,
    } else {
    }
    %c0 = arith.constant 0 : index
    %c0_1 = arith.constant 0 : index
    %3 = vector.load %arg2[%c0, %c0_1] : memref<2x1024xf32, #tpu.memory_space<vmem>>, vector<2x1024xf32>
    %c0_2 = arith.constant 0 : index
    %c0_3 = arith.constant 0 : index
    %4 = vector.load %arg3[%c0_2, %c0_3] : memref<2x1024xf32, #tpu.memory_space<vmem>>, vector<2x1024xf32>
    %5 = math.roundeven %4 : vector<2x1024xf32>
    %cst = arith.constant 2.000000e+00 : f32
    %6 = vector.broadcast %cst : f32 to vector<2x1024xf32>
    %7 = arith.mulf %6, %5 : vector<2x1024xf32>
    %cst_4 = arith.constant 1.000000e+00 : f32
    %8 = vector.broadcast %cst_4 : f32 to vector<2x1024xf32>
    %9 = arith.subf %7, %8 : vector<2x1024xf32>
    %10 = arith.mulf %3, %9 : vector<2x1024xf32>
    %cst_5 = arith.constant 1.000000e+00 : f32
    %11 = vector.broadcast %cst_5 : f32 to vector<2x1024xf32>
    %12 = arith.subf %11, %10 : vector<2x1024xf32>
    %cst_6 = arith.constant 0.000000e+00 : f32
    %13 = vector.broadcast %cst_6 : f32 to vector<2x1024xf32>
    %14 = arith.maximumf %13, %12 : vector<2x1024xf32>
    %c0_7 = arith.constant 0 : index
    %c0_8 = arith.constant 0 : index
    %15 = vector.load %arg5[%c0_7, %c0_8] : memref<8x1024xf32, #tpu.memory_space<vmem>>, vector<1x1024xf32>
    %cst_9 = arith.constant dense<0.000000e+00> : vector<1024xf32>
    %16 = vector.multi_reduction <add>, %14, %cst_9 [0] : vector<2x1024xf32> to vector<1024xf32>
    %17 = vector.shape_cast %16 : vector<1024xf32> to vector<1x1024xf32>
    %18 = arith.addf %15, %17 : vector<1x1024xf32>
    %c0_10 = arith.constant 0 : index
    %c0_11 = arith.constant 0 : index
    %19 = vector.load %arg5[%c0_10, %c0_11] : memref<8x1024xf32, #tpu.memory_space<vmem>>, vector<1x1024xf32>
    tpu.vector_store %arg5[%c0_10, %c0_11], %18 {strides = array<i32>} : memref<8x1024xf32, #tpu.memory_space<vmem>>, vector<1x1024xf32>,
    %c0_i32_12 = arith.constant 0 : i32
    %20 = arith.cmpi eq, %arg1, %c0_i32_12 : i32
    %21 = arith.extui %20 : i1 to i32
    %c0_i32_13 = arith.constant 0 : i32
    %22 = arith.cmpi ne, %21, %c0_i32_13 : i32
    scf.if %22 {
      %c0_14 = arith.constant 0 : index
      %c0_15 = arith.constant 0 : index
      %23 = vector.load %arg5[%c0_14, %c0_15] : memref<8x1024xf32, #tpu.memory_space<vmem>>, vector<8x1024xf32>
      %24 = vector.shape_cast %23 : vector<8x1024xf32> to vector<1x8x1024xf32>
      %cst_16 = arith.constant dense<0.000000e+00> : vector<1xf32>
      %25 = vector.multi_reduction <add>, %24, %cst_16 [1, 2] : vector<1x8x1024xf32> to vector<1xf32>
      %26 = vector.shape_cast %25 : vector<1xf32> to vector<1x1x1xf32>
      %27 = vector.extract %26[0, 0, 0] : f32 from vector<1x1x1xf32>
      %c0_17 = arith.constant 0 : index
      %c0_18 = arith.constant 0 : index
      %28 = memref.load %arg4[%c0_17, %c0_18] : memref<1x1xf32, #tpu.memory_space<smem>>
      memref.store %27, %arg4[%c0_17, %c0_18] : memref<1x1xf32, #tpu.memory_space<smem>>
    } else {
    }
    return
  }
  func.func @transform_0(%arg0: i32, %arg1: i32) -> (i32, i32) {
    %c1_i32 = arith.constant 1 : i32
    %0 = arith.muli %arg0, %c1_i32 : i32
    %1 = arith.addi %0, %arg1 : i32
    %c0_i32 = arith.constant 0 : i32
    %c0_i32_0 = arith.constant 0 : i32
    return %1, %c0_i32 : i32, i32
  }
  func.func @transform_1(%arg0: i32, %arg1: i32) -> (i32, i32) {
    %c1_i32 = arith.constant 1 : i32
    %0 = arith.muli %arg0, %c1_i32 : i32
    %1 = arith.addi %0, %arg1 : i32
    %c0_i32 = arith.constant 0 : i32
    %c0_i32_0 = arith.constant 0 : i32
    return %1, %c0_i32 : i32, i32
  }
  func.func @transform_2(%arg0: i32, %arg1: i32) -> (i32, i32) {
    %c0_i32 = arith.constant 0 : i32
    %c0_i32_0 = arith.constant 0 : i32
    return %arg0, %c0_i32 : i32, i32
  }
}

</mosaic_0001>

<llo_original>
// kernel: tpu_custom_call.1
$region0: #{tpu_custom_call.1}
  #allocation0 [shape = 'u32[]', space=smem, size = 0x4, offset = 0x4, fixed_abs, tag = 'smem constant byte address 0x4 - core index']
  #allocation1 [shape = 'u32[144,128]{1,0:T(1,128)}', space=vmem, size = 0x12000, scoped, tag = 'internal scratch']
  #allocation2 [shape = 'f32[8,1024]{1,0:T(8,128)}', space=vmem, size = 0x8000, scoped, tag = 'scratch operand']
  %s0 = inlined_call_operand.hbm [shape: f32[2,1024], index: 0, kind: input, shape index: {}]
  %s1 = inlined_call_operand.hbm [shape: f32[2,1024], index: 1, kind: input, shape index: {}]
  %s2 = inlined_call_operand.hbm [shape: f32[1,1], index: 2, kind: output, shape index: {}]
  %s3 = sld [smem:[#allocation0]]
  $region34: #{tpu_custom_call.1} parent=0
    _
  %s5 = ssub.s32 1, %s3
  %s6 = scalar_select 0, %s5, %s3
  $region1: #{tpu_custom_call.1} parent=0
    #allocation3 [shape = 'u8[8192]{0}', space=vmem, size = 0x2000, scoped, tag = 'input window, operand 0, single buffered']
    #allocation4 [shape = 's32[1]{0}', space=sflag, size = 0x4, scoped, tag = 'scoped memory for tpu_custom_call.1']
    #allocation5 [shape = 's32[1]{0}', space=sflag, size = 0x4, scoped, tag = 'scoped memory for tpu_custom_call.1']
    #allocation6 [shape = 'u8[8192]{0}', space=vmem, size = 0x2000, scoped, tag = 'input window, operand 1, single buffered']
    #allocation7 [shape = 's32[1]{0}', space=sflag, size = 0x4, scoped, tag = 'scoped memory for tpu_custom_call.1']
    #allocation8 [shape = 'u8[512]{0}', space=smem, size = 0x200, scoped, tag = 'output window, operand 0, single buffered']
    %7 = vsyncpa [#allocation4], 0
    %8 = vsyncpa [#allocation7], 0
    %9 = vsyncpa [#allocation5], 0
    // Predicated region
    $region2: #{tpu_custom_call.1} parent=1 // pred_check
      _
    $region3: #{tpu_custom_call.1} parent=1 // pred_check_branch
      %11 = sbr.rel (0) target = $region5
    $region4: #{tpu_custom_call.1} parent=1 // pred_region
      %s12 = sadd.s32 0, 0
      %s14 = ssub.s32 256, 256
      %15 = vsyncadd [#allocation4], %s14
      %s16 = smul.addr %s12, 8
      %s17 = smul.addr %s16, 32
      %s18 = scalar_lea.hbm %s0, %s17
      %s20 = sshll.u32 [#allocation3], 4
      %s21 = int_to_ptr.vmem [resolvable:$true] %s20
      %23 = dma.hbm_to_vmem [thread:$0]  %s18, 256, %s21, [#allocation4]
    $region5: #{tpu_custom_call.1} parent=1 // pred_fallthru
      _
    // Predicated region
    $region6: #{tpu_custom_call.1} parent=1 // pred_check
      _
    $region7: #{tpu_custom_call.1} parent=1 // pred_check_branch
      %25 = sbr.rel (0) target = $region9
    $region8: #{tpu_custom_call.1} parent=1 // pred_region
      %s26 = sadd.s32 0, 0
      %s28 = ssub.s32 256, 256
      %29 = vsyncadd [#allocation7], %s28
      %s30 = smul.addr %s26, 8
      %s31 = smul.addr %s30, 32
      %s32 = scalar_lea.hbm %s1, %s31
      %s34 = sshll.u32 [#allocation6], 4
      %s35 = int_to_ptr.vmem [resolvable:$true] %s34
      %37 = dma.hbm_to_vmem [thread:$0]  %s32, 256, %s35, [#allocation7]
    $region9: #{tpu_custom_call.1} parent=1 // pred_fallthru
      _
    // Predicated region
    $region10: #{tpu_custom_call.1} parent=1 // pred_check
      _
    $region11: #{tpu_custom_call.1} parent=1 // pred_check_branch
      %39 = sbr.rel (0) target = $region13
    $region12: #{tpu_custom_call.1} parent=1 // pred_region
      %40 = dma.done [#allocation4], 256
    $region13: #{tpu_custom_call.1} parent=1 // pred_fallthru
      _
    // Predicated region
    $region14: #{tpu_custom_call.1} parent=1 // pred_check
      _
    $region15: #{tpu_custom_call.1} parent=1 // pred_check_branch
      %42 = sbr.rel (0) target = $region17
    $region16: #{tpu_custom_call.1} parent=1 // pred_region
      %43 = dma.done [#allocation7], 256
    $region17: #{tpu_custom_call.1} parent=1 // pred_fallthru
      _
    %s44 = sadd.s32 0, 0
    %s45 = sadd.s32 0, 0
    %p46 = scmp.eq.s32.totalorder 0, 0
    // Predicated region
    $region18: #{tpu_custom_call.1} parent=1 // pred_check
      %p47 = pneg %p46
    $region19: #{tpu_custom_call.1} parent=1 // pred_check_branch
      %49 = sbr.rel (%p47) target = $region21
    $region20: #{tpu_custom_call.1} parent=1 // pred_region
      %50 = vst [vmem:[#allocation2] sm:$0xff] 0.0
      %51 = vst [vmem:[#allocation2 + $0x8] sm:$0xff] 0.0
      %52 = vst [vmem:[#allocation2 + $0x10] sm:$0xff] 0.0
      %53 = vst [vmem:[#allocation2 + $0x18] sm:$0xff] 0.0
      %54 = vst [vmem:[#allocation2 + $0x20] sm:$0xff] 0.0
      %55 = vst [vmem:[#allocation2 + $0x28] sm:$0xff] 0.0
      %56 = vst [vmem:[#allocation2 + $0x30] sm:$0xff] 0.0
      %57 = vst [vmem:[#allocation2 + $0x38] sm:$0xff] 0.0
    $region21: #{tpu_custom_call.1} parent=1 // pred_fallthru
      _
    %v58 = vld [vmem:[#allocation3] sm:$0xff]
    %v59 = vld [vmem:[#allocation3 + $0x8] sm:$0xff]
    %v60 = vld [vmem:[#allocation6] sm:$0xff]
    %v61 = vld [vmem:[#allocation6 + $0x8] sm:$0xff]
    %v62 = vround.ne.pseudo %v60
    %v63 = vround.ne.pseudo %v61
    %v64 = vmul.f32 %v62, 2.0
    %v65 = vmul.f32 %v63, 2.0
    %v66 = vsub.f32 %v64, 1.0
    %v67 = vsub.f32 %v65, 1.0
    %v68 = vmul.f32 %v58, %v66
    %v69 = vmul.f32 %v59, %v67
    %v70 = vsub.f32 1.0, %v68
    %v71 = vsub.f32 1.0, %v69
    %v72 = vmax.f32 %v70, 0.0
    %v73 = vmax.f32 %v71, 0.0
    %v74 = vld [vmem:[#allocation2] ss:$8 sm:$0xf]
    %v75 = vld [vmem:[#allocation2] ss:$8 sm:$0xf0]
    %v76 = vor.u32 %v74, %v75
    %v79 = vcombine.high %v72, %v72
    %v81 = vunpack.c.l.s4 1983009808
    %v82 = vunpack.c.0.s8 %v81
    %v83 = vlaneseq
    %v84 = vshrl.u32 %v83, 7
    %v85 = vsub.s32 %v82, %v84
    %v86 = vrot.slane %v72, %v85
    %v88 = vunpack.c.l.s4 1983009808
    %v89 = vunpack.c.0.s8 %v88
    %v90 = vlaneseq
    %v91 = vshrl.u32 %v90, 7
    %v92 = vsub.s32 %v89, %v91
    %v93 = vrot.slane %v79, %v92
    %v94 = vcombine.high %v86, %v86
    %v95 = vcombine.high %v93, %v93
    %v96 = vcombine.high %v73, %v73
    %v98 = vunpack.c.l.s4 1983009808
    %v99 = vunpack.c.0.s8 %v98
    %v100 = vlaneseq
    %v101 = vshrl.u32 %v100, 7
    %v102 = vsub.s32 %v99, %v101
    %v103 = vrot.slane %v73, %v102
    %v105 = vunpack.c.l.s4 1983009808
    %v106 = vunpack.c.0.s8 %v105
    %v107 = vlaneseq
    %v108 = vshrl.u32 %v107, 7
    %v109 = vsub.s32 %v106, %v108
    %v110 = vrot.slane %v96, %v109
    %v111 = vcombine.high %v103, %v103
    %v112 = vcombine.high %v110, %v110
    %vm121 = vcmask 1041408
    %v122 = vsel %vm121, %v86, 0.0
    %v123 = vrot.slane %v122, 4
    %v124 = vadd.f32 %v122, %v123
    %v125 = vrot.slane %v124, 2
    %v126 = vadd.f32 %v124, %v125
    %v127 = vrot.slane %v126, 1
    %v128 = vadd.f32 %v126, %v127
    %v129 = vsel %vm121, %v94, 0.0
    %v130 = vrot.slane %v129, 4
    %v131 = vadd.f32 %v129, %v130
    %v132 = vrot.slane %v131, 2
    %v133 = vadd.f32 %v131, %v132
    %v134 = vrot.slane %v133, 1
    %v135 = vadd.f32 %v133, %v134
    %v136 = vsel %vm121, %v93, 0.0
    %v137 = vrot.slane %v136, 4
    %v138 = vadd.f32 %v136, %v137
    %v139 = vrot.slane %v138, 2
    %v140 = vadd.f32 %v138, %v139
    %v141 = vrot.slane %v140, 1
    %v142 = vadd.f32 %v140, %v141
    %v143 = vsel %vm121, %v95, 0.0
    %v144 = vrot.slane %v143, 4
    %v145 = vadd.f32 %v143, %v144
    %v146 = vrot.slane %v145, 2
    %v147 = vadd.f32 %v145, %v146
    %v148 = vrot.slane %v147, 1
    %v149 = vadd.f32 %v147, %v148
    %v150 = vsel %vm121, %v103, 0.0
    %v151 = vrot.slane %v150, 4
    %v152 = vadd.f32 %v150, %v151
    %v153 = vrot.slane %v152, 2
    %v154 = vadd.f32 %v152, %v153
    %v155 = vrot.slane %v154, 1
    %v156 = vadd.f32 %v154, %v155
    %v157 = vsel %vm121, %v111, 0.0
    %v158 = vrot.slane %v157, 4
    %v159 = vadd.f32 %v157, %v158
    %v160 = vrot.slane %v159, 2
    %v161 = vadd.f32 %v159, %v160
    %v162 = vrot.slane %v161, 1
    %v163 = vadd.f32 %v161, %v162
    %v164 = vsel %vm121, %v110, 0.0
    %v165 = vrot.slane %v164, 4
    %v166 = vadd.f32 %v164, %v165
    %v167 = vrot.slane %v166, 2
    %v168 = vadd.f32 %v166, %v167
    %v169 = vrot.slane %v168, 1
    %v170 = vadd.f32 %v168, %v169
    %v171 = vsel %vm121, %v112, 0.0
    %v172 = vrot.slane %v171, 4
    %v173 = vadd.f32 %v171, %v172
    %v174 = vrot.slane %v173, 2
    %v175 = vadd.f32 %v173, %v174
    %v176 = vrot.slane %v175, 1
    %v177 = vadd.f32 %v175, %v176
    %v186 = vcombine.low %v128, %v135
    %v187 = vcombine.low %v142, %v149
    %v188 = vcombine.low %v156, %v163
    %v189 = vcombine.low %v170, %v177
    %v191 = vunpack.c.l.s4 1966171168
    %v192 = vunpack.c.0.s8 %v191
    %v193 = vlaneseq
    %v194 = vshrl.u32 %v193, 7
    %v195 = vsub.s32 %v192, %v194
    %v196 = vrot.slane %v186, %v195
    %v198 = vunpack.c.l.s4 1966171168
    %v199 = vunpack.c.0.s8 %v198
    %v200 = vlaneseq
    %v201 = vshrl.u32 %v200, 7
    %v202 = vsub.s32 %v199, %v201
    %v203 = vrot.slane %v187, %v202
    %v205 = vunpack.c.l.s4 1966171168
    %v206 = vunpack.c.0.s8 %v205
    %v207 = vlaneseq
    %v208 = vshrl.u32 %v207, 7
    %v209 = vsub.s32 %v206, %v208
    %v210 = vrot.slane %v188, %v209
    %v212 = vunpack.c.l.s4 1966171168
    %v213 = vunpack.c.0.s8 %v212
    %v214 = vlaneseq
    %v215 = vshrl.u32 %v214, 7
    %v216 = vsub.s32 %v213, %v215
    %v217 = vrot.slane %v189, %v216
    %v218 = vcombine.low %v196, %v203
    %v219 = vcombine.low %v210, %v217
    %v221 = vunpack.c.l.s4 1966171168
    %v222 = vunpack.c.0.s8 %v221
    %v223 = vlaneseq
    %v224 = vshrl.u32 %v223, 7
    %v225 = vsub.s32 %v222, %v224
    %v226 = vrot.slane %v218, %v225
    %v228 = vunpack.c.l.s4 1966171168
    %v229 = vunpack.c.0.s8 %v228
    %v230 = vlaneseq
    %v231 = vshrl.u32 %v230, 7
    %v232 = vsub.s32 %v229, %v231
    %v233 = vrot.slane %v219, %v232
    %v234 = vcombine.low %v226, %v233
    %v236 = vadd.f32 %v76, %v234
    %237 = vst [vmem:[#allocation2] ss:$8 sm:$0xf] %v236
    %238 = vst [vmem:[#allocation2] ss:$8 sm:$0xf0] %v236
    // Predicated region
    $region22: #{tpu_custom_call.1} parent=1 // pred_check
      %p239 = pneg %p46
    $region23: #{tpu_custom_call.1} parent=1 // pred_check_branch
      %241 = sbr.rel (%p239) target = $region25
    $region24: #{tpu_custom_call.1} parent=1 // pred_region
      %v242 = vld [vmem:[#allocation2] sm:$0xff]
      %v243 = vld [vmem:[#allocation2 + $0x8] sm:$0xff]
      %v244 = vld [vmem:[#allocation2 + $0x10] sm:$0xff]
      %v245 = vld [vmem:[#allocation2 + $0x18] sm:$0xff]
      %v246 = vld [vmem:[#allocation2 + $0x20] sm:$0xff]
      %v247 = vld [vmem:[#allocation2 + $0x28] sm:$0xff]
      %v248 = vld [vmem:[#allocation2 + $0x30] sm:$0xff]
      %v249 = vld [vmem:[#allocation2 + $0x38] sm:$0xff]
      %v250 = vadd.f32 %v242, %v243
      %v251 = vadd.f32 %v250, %v244
      %v252 = vadd.f32 %v251, %v245
      %v253 = vadd.f32 %v252, %v246
      %v254 = vadd.f32 %v253, %v247
      %v255 = vadd.f32 %v254, %v248
      %v256 = vadd.f32 %v255, %v249
      %257 = vadd.xlane.f32.xlu0 %v256
      %v258 = vpop.xlane.xlu0 %257
      %v259 = vrot.slane %v258, 4
      %v260 = vadd.f32 %v258, %v259
      %v261 = vrot.slane %v260, 2
      %v262 = vadd.f32 %v260, %v261
      %v263 = vrot.slane %v262, 1
      %v264 = vadd.f32 %v262, %v263
      %s265 = vtos %v264
      %s266 = scalar_lea.smem [#allocation8], 0
      %267 = sst [smem:[%s266]] %s265
    $region25: #{tpu_custom_call.1} parent=1 // pred_fallthru
      _
    // Predicated region
    $region26: #{tpu_custom_call.1} parent=1 // pred_check
      _
    $region27: #{tpu_custom_call.1} parent=1 // pred_check_branch
      %269 = sbr.rel (0) target = $region29
    $region28: #{tpu_custom_call.1} parent=1 // pred_region
      %s271 = ssub.s32 16, 16
      %272 = vsyncadd [#allocation5], %s271
      %275 = dma.smem_to_hbm [#allocation8], 16, %s2, [#allocation5]
    $region29: #{tpu_custom_call.1} parent=1 // pred_fallthru
      _
    // Predicated region
    $region30: #{tpu_custom_call.1} parent=1 // pred_check
      _
    $region31: #{tpu_custom_call.1} parent=1 // pred_check_branch
      %277 = sbr.rel (0) target = $region33
    $region32: #{tpu_custom_call.1} parent=1 // pred_region
      %278 = dma.done [#allocation5], 16
    $region33: #{tpu_custom_call.1} parent=1 // pred_fallthru
      _
    %279 = sfence
    %280 = vsyncpa [#allocation4], 1
    %281 = vsyncpa [#allocation7], 1
    %282 = vsyncpa [#allocation5], 1

</llo_original>
